<compile_context>
chip_gen: v7x
topology: tpu7x:2x2x1
jax: 0.10.0
libtpu: 0.0.40
codegen_flags: <defaults>
</compile_context>

<pallas_src>
import functools
import math

import jax
import jax.numpy as jnp
from jax.experimental import pallas as pl
from jax.experimental.pallas import tpu as pltpu


_NOPAD = ((0, 0), (0, 0))


# ----------------------------------------------------------------------------
# Small helpers
# ----------------------------------------------------------------------------
def _round_up(x, m):
    return -(-x // m) * m


def _largest_div(x, candidates):
    for c in candidates:
        if x % c == 0:
            return c
    return x


# ----------------------------------------------------------------------------
# Pallas kernels
# ----------------------------------------------------------------------------
@functools.lru_cache(maxsize=None)
def _make_gemm_kernel(relu, fuse_residual):
    """GEMM (bf16 MXU, f32 accum) + folded BN (+conv bias) [+residual] [+ReLU]."""

    def kernel(x_ref, w_ref, scale_ref, shift_ref, *rest):
        if fuse_residual:
            res_ref, o_ref, acc_ref = rest
        else:
            o_ref, acc_ref = rest

        k = pl.program_id(2)

        @pl.when(k == 0)
        def _init():
            acc_ref[...] = jnp.zeros_like(acc_ref)

        acc_ref[...] += jnp.dot(x_ref[...], w_ref[...],
                                preferred_element_type=jnp.float32)

        @pl.when(k == pl.num_programs(2) - 1)
        def _finalize():
            y = acc_ref[...] * scale_ref[...] + shift_ref[...]
            if fuse_residual:
                y = y + res_ref[...].astype(jnp.float32)
            if relu:
                y = jnp.maximum(y, 0.0)
            o_ref[...] = y.astype(o_ref.dtype)

    return kernel


def _max9_kernel(*refs):
    """Elementwise max over 9 pre-sliced pooling windows (VPU)."""
    o_ref = refs[-1]
    m = refs[0][...]
    for r in refs[1:-1]:
        m = jnp.maximum(m, r[...])
    o_ref[...] = m


# ----------------------------------------------------------------------------
# Pallas wrappers
# ----------------------------------------------------------------------------
def gemm_bn_act(x, w, scale, shift, *, relu, residual=None,
                out_dtype=jnp.bfloat16):
    """x: (M, K), w: (K, N), scale/shift: (N,), residual: (M, N) or None."""
    M, K = x.shape
    Kw, N = w.shape
    assert K == Kw

    # --- K tiling (pad to 128-multiple for lane-aligned MXU loads) -----------
    if K % 128 == 0:
        K_pad, TK = K, _largest_div(K, (1024, 512, 256, 128))
    elif K < 128:
        K_pad, TK = K, K                       # full-dim exemption
    else:
        K_pad = _round_up(K, 128)
        TK = _largest_div(K_pad, (1024, 512, 256, 128))

    # --- N tiling ------------------------------------------------------------
    if N % 256 == 0:
        TN = 256
    elif N % 128 == 0:
        TN = 128
    else:
        TN = N                                  # e.g. N=64, full-dim exemption

    # --- M tiling (keep >=2 parallel grid steps when possible) ---------------
    if M >= 256:
        M_pad, TM = _round_up(M, 256), 256
    else:
        M_pad = _round_up(M, 8)
        TM = M_pad

    xb = x.astype(jnp.bfloat16)
    wb = w.astype(jnp.bfloat16)
    if K_pad != K:
        xb = jnp.pad(xb, ((0, 0), (0, K_pad - K)))
        wb = jnp.pad(wb, ((0, K_pad - K), (0, 0)))
    if M_pad != M:
        xb = jnp.pad(xb, ((0, M_pad - M), (0, 0)))

    scale2 = scale.reshape(1, N).astype(jnp.float32)
    shift2 = shift.reshape(1, N).astype(jnp.float32)

    in_specs = [
        pl.BlockSpec((TM, TK), lambda i, j, k: (i, k)),
        pl.BlockSpec((TK, TN), lambda i, j, k: (k, j)),
        pl.BlockSpec((1, TN), lambda i, j, k: (0, j)),
        pl.BlockSpec((1, TN), lambda i, j, k: (0, j)),
    ]
    args = [xb, wb, scale2, shift2]

    fuse_residual = residual is not None
    if fuse_residual:
        rb = residual.astype(jnp.bfloat16)
        if M_pad != M:
            rb = jnp.pad(rb, ((0, M_pad - M), (0, 0)))
        in_specs.append(pl.BlockSpec((TM, TN), lambda i, j, k: (i, j)))
        args.append(rb)

    out = pl.pallas_call(
        _make_gemm_kernel(relu, fuse_residual),
        out_shape=jax.ShapeDtypeStruct((M_pad, N), out_dtype),
        grid_spec=pltpu.PrefetchScalarGridSpec(
            num_scalar_prefetch=0,
            grid=(M_pad // TM, N // TN, K_pad // TK),
            in_specs=in_specs,
            out_specs=pl.BlockSpec((TM, TN), lambda i, j, k: (i, j)),
            scratch_shapes=[pltpu.VMEM((TM, TN), jnp.float32)],
        ),
        compiler_params=pltpu.CompilerParams(
            dimension_semantics=("parallel", "parallel", "arbitrary")),
    )(*args)

    if M_pad != M:
        out = out[:M]
    return out


def maxpool9(slices):
    """slices: list of 9 arrays (M, C); returns elementwise max, tiled over M."""
    M, C = slices[0].shape
    if M >= 512:
        M_pad, TM = _round_up(M, 256), 256      # >=2 parallel steps (megacore)
    elif M >= 256:
        M_pad, TM = _round_up(M, 128), 128
    else:
        M_pad = _round_up(M, 8)
        TM = M_pad
    if M_pad != M:
        slices = [jnp.pad(s, ((0, M_pad - M), (0, 0))) for s in slices]

    out = pl.pallas_call(
        _max9_kernel,
        out_shape=jax.ShapeDtypeStruct((M_pad, C), slices[0].dtype),
        grid=(M_pad // TM,),
        in_specs=[pl.BlockSpec((TM, C), lambda i: (i, 0)) for _ in slices],
        out_specs=pl.BlockSpec((TM, C), lambda i: (i, 0)),
        compiler_params=pltpu.CompilerParams(
            dimension_semantics=("parallel",)),
    )(*slices)
    if M_pad != M:
        out = out[:M]
    return out


# ----------------------------------------------------------------------------
# JAX glue: padding + patch extraction
# ----------------------------------------------------------------------------
def same_pad_amounts(h, w, k, s):
    """Faithful port of SamePad2d.forward (width/height naming swap kept).

    Returns ((top, bottom), (left, right)) pads for the H and W dims of NHWC.
    Correct for square inputs (as used here).
    """
    in_width, in_height = h, w                 # input.size(2), input.size(3)
    out_width = math.ceil(float(in_width) / float(s))
    out_height = math.ceil(float(in_height) / float(s))
    pad_along_width = (out_width - 1) * s + k - in_width
    pad_along_height = (out_height - 1) * s + k - in_height
    pad_left = pad_along_width // 2
    pad_top = pad_along_height // 2
    pad_right = pad_along_width - pad_left
    pad_bottom = pad_along_height - pad_top
    return (pad_top, pad_bottom), (pad_left, pad_right)


def extract_patches(x, kh, kw, stride):
    """x: (N, H, W, C) already padded -> (N*oh*ow, kh*kw*C), oh, ow."""
    n, h, w, c = x.shape
    oh = (h - kh) // stride + 1
    ow = (w - kw) // stride + 1
    cols = []
    for i in range(kh):
        for j in range(kw):
            cols.append(
                jax.lax.slice(
                    x,
                    (0, i, j, 0),
                    (n, i + (oh - 1) * stride + 1, j + (ow - 1) * stride + 1, c),
                    (1, stride, stride, 1),
                )
            )
    patches = jnp.stack(cols, axis=-2)           # (N, oh, ow, kh*kw, C)
    return patches.reshape(n * oh * ow, kh * kw * c), oh, ow


def conv_bn(x, cp, stride, pad, relu, residual=None):
    """x: (N, H, W, C) bf16.  cp: {'w2': (K, cout), 'scale', 'shift', 'kh', ...}."""
    kh, kw, cout = cp["kh"], cp["kw"], cp["cout"]
    n = x.shape[0]
    if kh == 1 and kw == 1:
        # 1x1 conv: no im2col, just (strided) reshape of the NHWC activation.
        if stride > 1:
            x = x[:, ::stride, ::stride, :]
        oh, ow = x.shape[1], x.shape[2]
        xm = x.reshape(n * oh * ow, x.shape[3])
    else:
        xp = jnp.pad(x, ((0, 0), pad[0], pad[1], (0, 0)))
        xm, oh, ow = extract_patches(xp, kh, kw, stride)

    res_m = None
    if residual is not None:
        res_m = residual.reshape(n * oh * ow, cout)

    y = gemm_bn_act(xm, cp["w2"], cp["scale"], cp["shift"],
                    relu=relu, residual=res_m)
    return y.reshape(n, oh, ow, cout)


# ----------------------------------------------------------------------------
# Parameter init (deterministic, synthetic)
# ----------------------------------------------------------------------------
_BN_EPS = 1e-3


def init_conv_bn(key, cin, cout, kh, kw):
    k1, k2, k3, k4, k5, k6 = jax.random.split(key, 6)
    fan_in = kh * kw * cin
    w = jax.random.normal(k1, (kh, kw, cin, cout), jnp.float32) * jnp.sqrt(2.0 / fan_in)
    conv_b = 0.01 * jax.random.normal(k2, (cout,), jnp.float32)
    gamma = 1.0 + 0.05 * jax.random.normal(k3, (cout,), jnp.float32)
    beta = 0.05 * jax.random.normal(k4, (cout,), jnp.float32)
    run_mean = 0.05 * jax.random.normal(k5, (cout,), jnp.float32)
    run_var = 1.0 + 0.05 * jnp.abs(jax.random.normal(k6, (cout,), jnp.float32))
    scale = gamma / jnp.sqrt(run_var + _BN_EPS)
    shift = beta - run_mean * scale + conv_b * scale     # conv bias folded in
    return {
        "w2": w.reshape(kh * kw * cin, cout).astype(jnp.bfloat16),
        "scale": scale, "shift": shift,
        "kh": kh, "kw": kw, "cin": cin, "cout": cout,
    }


def init_bottleneck(key, inplanes, planes, stride, has_downsample):
    keys = jax.random.split(key, 4)
    return {
        "stride": stride,
        "conv1": init_conv_bn(keys[0], inplanes, planes, 1, 1),
        "conv2": init_conv_bn(keys[1], planes, planes, 3, 3),
        "conv3": init_conv_bn(keys[2], planes, planes * 4, 1, 1),
        "downsample": (init_conv_bn(keys[3], inplanes, planes * 4, 1, 1)
                       if has_downsample else None),
    }


def init_resnet(key, architecture="resnet50", stage5=False):
    assert architecture in ["resnet50", "resnet101"]
    layers = [3, 4, {"resnet50": 6, "resnet101": 23}[architecture], 3]
    keys = jax.random.split(key, 6)
    params = {"c1": init_conv_bn(keys[0], 3, 64, 7, 7), "stages": []}
    inplanes = 64

    def make_stage(k, inpl, planes, blocks, stride):
        ks = jax.random.split(k, blocks)
        ds = (stride != 1) or (inpl != planes * 4)
        blks = [init_bottleneck(ks[0], inpl, planes, stride, ds)]
        inpl = planes * 4
        for i in range(1, blocks):
            blks.append(init_bottleneck(ks[i], inpl, planes, 1, False))
        return blks, inpl

    stage_defs = [(64, layers[0], 1), (128, layers[1], 2), (256, layers[2], 2)]
    if stage5:
        stage_defs.append((512, layers[3], 2))
    for i, (planes, blocks, stride) in enumerate(stage_defs):
        blks, inplanes = make_stage(keys[i + 1], inplanes, planes, blocks, stride)
        params["stages"].append(blks)
    return params


# ----------------------------------------------------------------------------
# Forward pass
# ----------------------------------------------------------------------------
def bottleneck_forward(x, p):
    s = p["stride"]
    out = conv_bn(x, p["conv1"], stride=s, pad=_NOPAD, relu=True)
    ph, pw = same_pad_amounts(out.shape[1], out.shape[2], 3, 1)     # SamePad2d(3,1)
    out = conv_bn(out, p["conv2"], stride=1, pad=(ph, pw), relu=True)
    if p["downsample"] is not None:
        residual = conv_bn(x, p["downsample"], stride=s, pad=_NOPAD, relu=False)
    else:
        residual = x
    # conv3 + BN3 + residual add + ReLU fused into one GEMM epilogue.
    return conv_bn(out, p["conv3"], stride=1, pad=_NOPAD, relu=True,
                   residual=residual)


def c1_forward(x, c1p):
    # Conv2d(3,64,k=7,s=2,p=3) + BN + ReLU
    x = conv_bn(x, c1p, stride=2, pad=((3, 3), (3, 3)), relu=True)
    # SamePad2d(3,2) then MaxPool2d(3, stride=2)
    ph, pw = same_pad_amounts(x.shape[1], x.shape[2], 3, 2)
    xp = jnp.pad(x, ((0, 0), ph, pw, (0, 0)))          # constant 0; input is post-ReLU
    n, hp, wp, c = xp.shape
    oh = (hp - 3) // 2 + 1
    ow = (wp - 3) // 2 + 1
    slices = []
    for i in range(3):
        for j in range(3):
            s = jax.lax.slice(
                xp, (0, i, j, 0),
                (n, i + (oh - 1) * 2 + 1, j + (ow - 1) * 2 + 1, c),
                (1, 2, 2, 1))
            slices.append(s.reshape(n * oh * ow, c))
    out = maxpool9(slices)
    return out.reshape(n, oh, ow, c)


def resnet_forward(params, x_nchw):
    x = jnp.transpose(x_nchw, (0, 2, 3, 1)).astype(jnp.bfloat16)   # NCHW -> NHWC bf16
    x = c1_forward(x, params["c1"])
    for stage in params["stages"]:
        for blk in stage:
            x = bottleneck_forward(x, blk)
    return jnp.transpose(x, (0, 3, 1, 2)).astype(jnp.float32)      # NHWC -> NCHW f32


# ----------------------------------------------------------------------------
# Main
# ----------------------------------------------------------------------------
if __name__ == "__main__":
    root = jax.random.PRNGKey(0)
    k_params, k_input = jax.random.split(root)

    params = init_resnet(k_params, architecture="resnet50", stage5=False)

    # Small-but-valid input: 4 stride-2 reductions (conv1, maxpool, C3, C4)
    # => 64x64 input -> 4x4 C4 feature map with 1024 channels.
    x = jax.random.normal(k_input, (2, 3, 64, 64), jnp.float32)

    out = resnet_forward(params, x)
    out = jax.block_until_ready(out)

    assert out.shape == (2, 1024, 4, 4), out.shape
    assert bool(jnp.all(jnp.isfinite(out)))
    print("KERNEL_OK")
</pallas_src>

<mosaic_0001>
module attributes {stable_mosaic.version = 11 : i64} {
  func.func @kernel(%arg0: i32, %arg1: i32, %arg2: i32, %arg3: memref<256x256xbf16, #tpu.memory_space<vmem>>, %arg4: memref<256x64xbf16, #tpu.memory_space<vmem>>, %arg5: memref<1x64xf32, #tpu.memory_space<vmem>>, %arg6: memref<1x64xf32, #tpu.memory_space<vmem>>, %arg7: memref<256x64xbf16, #tpu.memory_space<vmem>>, %arg8: memref<256x64xf32, #tpu.memory_space<vmem>>) attributes {dimension_semantics = [#tpu.dimension_semantics<parallel>, #tpu.dimension_semantics<parallel>, #tpu.dimension_semantics<arbitrary>], iteration_bounds = array<i64: 8, 1, 1>, scalar_prefetch = 0 : i64, scratch_operands = 1 : i64, tpu.core_type = #tpu.core_type<tc>, window_params = [{transform_indices = @transform_0, window_bounds = array<i64: 256, 256>}, {transform_indices = @transform_1, window_bounds = array<i64: 256, 64>}, {transform_indices = @transform_2, window_bounds = array<i64: 1, 64>}, {transform_indices = @transform_3, window_bounds = array<i64: 1, 64>}, {transform_indices = @transform_4, window_bounds = array<i64: 256, 64>}]} {
    %c0_i32 = arith.constant 0 : i32
    %0 = arith.cmpi eq, %arg2, %c0_i32 : i32
    %1 = arith.extui %0 : i1 to i32
    %c0_i32_0 = arith.constant 0 : i32
    %2 = arith.cmpi ne, %1, %c0_i32_0 : i32
    scf.if %2 {
      %cst_10 = arith.constant 0.000000e+00 : f32
      %12 = vector.broadcast %cst_10 : f32 to vector<256x64xf32>
      %c0_11 = arith.constant 0 : index
      %c0_12 = arith.constant 0 : index
      %13 = vector.load %arg8[%c0_11, %c0_12] : memref<256x64xf32, #tpu.memory_space<vmem>>, vector<256x64xf32>
      tpu.vector_store %arg8[%c0_11, %c0_12], %12 {strides = array<i32>} : memref<256x64xf32, #tpu.memory_space<vmem>>, vector<256x64xf32>,
    } else {
    }
    %c0 = arith.constant 0 : index
    %c0_1 = arith.constant 0 : index
    %3 = vector.load %arg8[%c0, %c0_1] : memref<256x64xf32, #tpu.memory_space<vmem>>, vector<256x64xf32>
    %c0_2 = arith.constant 0 : index
    %c0_3 = arith.constant 0 : index
    %4 = vector.load %arg3[%c0_2, %c0_3] : memref<256x256xbf16, #tpu.memory_space<vmem>>, vector<256x256xbf16>
    %c0_4 = arith.constant 0 : index
    %c0_5 = arith.constant 0 : index
    %5 = vector.load %arg4[%c0_4, %c0_5] : memref<256x64xbf16, #tpu.memory_space<vmem>>, vector<256x64xbf16>
    %cst = arith.constant dense<0.000000e+00> : vector<256x64xf32>
    %6 = tpu.matmul %4, %5, %cst {dimension_numbers = #tpu.dot_dimension_numbers<[1], [0], [0], [1], [0, 0, 1, 1], [], []>} : vector<256x256xbf16>, vector<256x64xbf16>, vector<256x64xf32> -> vector<256x64xf32>
    %7 = arith.addf %3, %6 : vector<256x64xf32>
    %c0_6 = arith.constant 0 : index
    %c0_7 = arith.constant 0 : index
    %8 = vector.load %arg8[%c0_6, %c0_7] : memref<256x64xf32, #tpu.memory_space<vmem>>, vector<256x64xf32>
    tpu.vector_store %arg8[%c0_6, %c0_7], %7 {strides = array<i32>} : memref<256x64xf32, #tpu.memory_space<vmem>>, vector<256x64xf32>,
    %c0_i32_8 = arith.constant 0 : i32
    %9 = arith.cmpi eq, %arg2, %c0_i32_8 : i32
    %10 = arith.extui %9 : i1 to i32
    %c0_i32_9 = arith.constant 0 : i32
    %11 = arith.cmpi ne, %10, %c0_i32_9 : i32
    scf.if %11 {
      %c0_10 = arith.constant 0 : index
      %c0_11 = arith.constant 0 : index
      %12 = vector.load %arg8[%c0_10, %c0_11] : memref<256x64xf32, #tpu.memory_space<vmem>>, vector<256x64xf32>
      %c0_12 = arith.constant 0 : index
      %c0_13 = arith.constant 0 : index
      %13 = vector.load %arg5[%c0_12, %c0_13] : memref<1x64xf32, #tpu.memory_space<vmem>>, vector<1x64xf32>
      %14 = vector.broadcast %13 : vector<1x64xf32> to vector<256x64xf32>
      %15 = arith.mulf %12, %14 : vector<256x64xf32>
      %c0_14 = arith.constant 0 : index
      %c0_15 = arith.constant 0 : index
      %16 = vector.load %arg6[%c0_14, %c0_15] : memref<1x64xf32, #tpu.memory_space<vmem>>, vector<1x64xf32>
      %17 = vector.broadcast %16 : vector<1x64xf32> to vector<256x64xf32>
      %18 = arith.addf %15, %17 : vector<256x64xf32>
      %cst_16 = arith.constant 0.000000e+00 : f32
      %19 = vector.broadcast %cst_16 : f32 to vector<256x64xf32>
      %20 = arith.maximumf %18, %19 : vector<256x64xf32>
      %21 = arith.truncf %20 : vector<256x64xf32> to vector<256x64xbf16>
      %c0_17 = arith.constant 0 : index
      %c0_18 = arith.constant 0 : index
      %22 = vector.load %arg7[%c0_17, %c0_18] : memref<256x64xbf16, #tpu.memory_space<vmem>>, vector<256x64xbf16>
      tpu.vector_store %arg7[%c0_17, %c0_18], %21 {strides = array<i32>} : memref<256x64xbf16, #tpu.memory_space<vmem>>, vector<256x64xbf16>,
    } else {
    }
    return
  }
  func.func @transform_0(%arg0: i32, %arg1: i32, %arg2: i32) -> (i32, i32) {
    %c0_i32 = arith.constant 0 : i32
    return %arg0, %arg2 : i32, i32
  }
  func.func @transform_1(%arg0: i32, %arg1: i32, %arg2: i32) -> (i32, i32) {
    %c0_i32 = arith.constant 0 : i32
    return %arg2, %arg1 : i32, i32
  }
  func.func @transform_2(%arg0: i32, %arg1: i32, %arg2: i32) -> (i32, i32) {
    %c0_i32 = arith.constant 0 : i32
    %c0_i32_0 = arith.constant 0 : i32
    return %c0_i32, %arg1 : i32, i32
  }
  func.func @transform_3(%arg0: i32, %arg1: i32, %arg2: i32) -> (i32, i32) {
    %c0_i32 = arith.constant 0 : i32
    %c0_i32_0 = arith.constant 0 : i32
    return %c0_i32, %arg1 : i32, i32
  }
  func.func @transform_4(%arg0: i32, %arg1: i32, %arg2: i32) -> (i32, i32) {
    %c0_i32 = arith.constant 0 : i32
    return %arg0, %arg1 : i32, i32
  }
}

</mosaic_0001>

<llo_original>
// kernel: tpu_custom_call.1
$region0: #{tpu_custom_call.1}
  #allocation0 [shape = 'u32[]', space=smem, size = 0x4, offset = 0x4, fixed_abs, tag = 'smem constant byte address 0x4 - core index']
  #allocation1 [shape = 'u32[144,128]{1,0:T(1,128)}', space=vmem, size = 0x12000, scoped, tag = 'internal scratch']
  #allocation2 [shape = 'f32[256,64]{1,0:T(8,128)}', space=vmem, size = 0x20000, scoped, tag = 'scratch operand']
  %s0 = inlined_call_operand.hbm [shape: bf16[2048,256], index: 0, kind: input, shape index: {}]
  %s1 = inlined_call_operand.vmem [shape: bf16[256,64], index: 1, kind: input, shape index: {}]
  %s2 = inlined_call_operand.vmem [shape: f32[1,64], index: 2, kind: input, shape index: {}]
  %s3 = inlined_call_operand.vmem [shape: f32[1,64], index: 3, kind: input, shape index: {}]
  %s4 = inlined_call_operand.vmem [shape: bf16[2048,64], index: 4, kind: output, shape index: {}]
  %s5 = sld [smem:[#allocation0]]
  $region61: #{tpu_custom_call.1} parent=0
    _
  %s7 = ssub.s32 1, %s5
  %s8 = scalar_select 0, %s7, %s5
  $region1: #{tpu_custom_call.1} parent=0
    #allocation3 [shape = 'u8[262144]{0}', space=vmem, size = 0x40000, scoped, tag = 'input window, operand 0']
    #allocation4 [shape = 's32[2]{0}', space=sflag, size = 0x8, scoped, tag = 'scoped memory for tpu_custom_call.1']
    %9 = vsyncpa [#allocation4], 0
    %s10 = scalar_lea.sflag [#allocation4], 1
    %11 = vsyncpa %s10, 0
    loop: start=0, step=1, limit=10
    $region2: #{tpu_custom_call.1} parent=1 // loop_pre_header
      _
    $region3: #{tpu_custom_call.1} parent=1 // loop_header
      %s13 = sphi 0, %s17
      %p14 = scmp.ge.s32.totalorder %s13, 10
      %s20 = sphi 0, %s39
      %s21 = sphi 0, %s35
      %s22 = sphi 0, %s31
      %s23 = sphi 0, %s20
      %s24 = sphi 0, %s21
      %s25 = sphi 0, %s22
      %s26 = sphi 0, %s23
      %s27 = sphi 0, %s24
      %s28 = sphi 0, %s25
      %s44 = sphi 0, %s46
      %s47 = sphi 0, %s44
      %s48 = sphi 0, %s47
      %s64 = sphi 0, %s48
      %s72 = sphi 0, %s74
      %s75 = sphi 0, %s72
      %s76 = sphi 0, %s75
      %s92 = sphi 0, %s76
      %s98 = sphi 0, %s100
      %s101 = sphi 0, %s98
      %s102 = sphi 0, %s101
      %s118 = sphi 0, %s102
      %s124 = sphi 0, %s126
      %s127 = sphi 0, %s124
      %s128 = sphi 0, %s127
      %s144 = sphi 0, %s128
      %s152 = sphi 0, %s154
      %s155 = sphi 0, %s152
      %s156 = sphi 0, %s155
      %s172 = sphi 0, %s156
    $region4: #{tpu_custom_call.1} parent=1 // loop_header_branch
      %16 = sbr.rel (%p14) target = $region8
    $region5: #{tpu_custom_call.1} parent=1 // loop_body
      %s18 = ssub.s32 %s13, 1
      %s19 = ssub.s32 %s13, 2
      %s29 = sadd.s32 1, %s22
      %p30 = scmp.ge.s32.totalorder %s29, 1
      %s31 = scalar_select %p30, 0, %s29
      %s32 = sadd.s32 1, %s21
      %s33 = scalar_select %p30, %s32, %s21
      %p34 = scmp.ge.s32.totalorder %s33, 1
      %s35 = scalar_select %p34, 0, %s33
      %s36 = sadd.s32 1, %s20
      %s37 = scalar_select %p34, %s36, %s20
      %p38 = scmp.ge.s32.totalorder %s37, 8
      %s39 = scalar_select %p38, 0, %s37
      %s40 = ssub.s32 %s20, %s39
      %s41 = ssub.s32 %s22, %s31
      %s42 = sor.u32 %s40, %s41
      %p43 = scmp.eq.s32.totalorder %s42, 0
      %s45 = sadd.s32 %s44, 1
      %s46 = scalar_select %p43, %s44, %s45
      %p49 = pneg %p43
      %p50 = scmp.eq.s32.totalorder %s13, 7
      %p51 = por %p49, %p50
      %p52 = scmp.ne.s32.totalorder %s44, %s47
      %p53 = scmp.eq.s32.totalorder %s13, 0
      %p54 = por %p52, %p53
      %p55 = scmp.ne.s32.totalorder %s44, %s47
      %p56 = scmp.eq.s32.totalorder %s18, 7
      %p57 = por %p55, %p56
      %p58 = scmp.ne.s32.totalorder %s47, %s48
      %p59 = scmp.eq.s32.totalorder %s18, 0
      %p60 = por %p58, %p59
      %p61 = scmp.ne.s32.totalorder %s47, %s48
      %p62 = scmp.eq.s32.totalorder %s19, 7
      %p63 = por %p61, %p62
      %p65 = scmp.ne.s32.totalorder %s48, %s64
      %p66 = scmp.eq.s32.totalorder %s19, 0
      %p67 = por %p65, %p66
      %s68 = ssub.s32 %s22, %s31
      %s69 = ssub.s32 %s21, %s35
      %s70 = sor.u32 %s68, %s69
      %p71 = scmp.eq.s32.totalorder %s70, 0
      %s73 = sadd.s32 %s72, 1
      %s74 = scalar_select %p71, %s72, %s73
      %p77 = pneg %p71
      %p78 = scmp.eq.s32.totalorder %s13, 7
      %p79 = por %p77, %p78
      %p80 = scmp.ne.s32.totalorder %s72, %s75
      %p81 = scmp.eq.s32.totalorder %s13, 0
      %p82 = por %p80, %p81
      %p83 = scmp.ne.s32.totalorder %s72, %s75
      %p84 = scmp.eq.s32.totalorder %s18, 7
      %p85 = por %p83, %p84
      %p86 = scmp.ne.s32.totalorder %s75, %s76
      %p87 = scmp.eq.s32.totalorder %s18, 0
      %p88 = por %p86, %p87
      %p89 = scmp.ne.s32.totalorder %s75, %s76
      %p90 = scmp.eq.s32.totalorder %s19, 7
      %p91 = por %p89, %p90
      %p93 = scmp.ne.s32.totalorder %s76, %s92
      %p94 = scmp.eq.s32.totalorder %s19, 0
      %p95 = por %p93, %p94
      %s96 = ssub.s32 %s21, %s35
      %p97 = scmp.eq.s32.totalorder %s96, 0
      %s99 = sadd.s32 %s98, 1
      %s100 = scalar_select %p97, %s98, %s99
      %p103 = pneg %p97
      %p104 = scmp.eq.s32.totalorder %s13, 7
      %p105 = por %p103, %p104
      %p106 = scmp.ne.s32.totalorder %s98, %s101
      %p107 = scmp.eq.s32.totalorder %s13, 0
      %p108 = por %p106, %p107
      %p109 = scmp.ne.s32.totalorder %s98, %s101
      %p110 = scmp.eq.s32.totalorder %s18, 7
      %p111 = por %p109, %p110
      %p112 = scmp.ne.s32.totalorder %s101, %s102
      %p113 = scmp.eq.s32.totalorder %s18, 0
      %p114 = por %p112, %p113
      %p115 = scmp.ne.s32.totalorder %s101, %s102
      %p116 = scmp.eq.s32.totalorder %s19, 7
      %p117 = por %p115, %p116
      %p119 = scmp.ne.s32.totalorder %s102, %s118
      %p120 = scmp.eq.s32.totalorder %s19, 0
      %p121 = por %p119, %p120
      %s122 = ssub.s32 %s21, %s35
      %p123 = scmp.eq.s32.totalorder %s122, 0
      %s125 = sadd.s32 %s124, 1
      %s126 = scalar_select %p123, %s124, %s125
      %p129 = pneg %p123
      %p130 = scmp.eq.s32.totalorder %s13, 7
      %p131 = por %p129, %p130
      %p132 = scmp.ne.s32.totalorder %s124, %s127
      %p133 = scmp.eq.s32.totalorder %s13, 0
      %p134 = por %p132, %p133
      %p135 = scmp.ne.s32.totalorder %s124, %s127
      %p136 = scmp.eq.s32.totalorder %s18, 7
      %p137 = por %p135, %p136
      %p138 = scmp.ne.s32.totalorder %s127, %s128
      %p139 = scmp.eq.s32.totalorder %s18, 0
      %p140 = por %p138, %p139
      %p141 = scmp.ne.s32.totalorder %s127, %s128
      %p142 = scmp.eq.s32.totalorder %s19, 7
      %p143 = por %p141, %p142
      %p145 = scmp.ne.s32.totalorder %s128, %s144
      %p146 = scmp.eq.s32.totalorder %s19, 0
      %p147 = por %p145, %p146
      %s148 = ssub.s32 %s20, %s39
      %s149 = ssub.s32 %s21, %s35
      %s150 = sor.u32 %s148, %s149
      %p151 = scmp.eq.s32.totalorder %s150, 0
      %s153 = sadd.s32 %s152, 1
      %s154 = scalar_select %p151, %s152, %s153
      %p157 = pneg %p151
      %p158 = scmp.eq.s32.totalorder %s13, 7
      %p159 = por %p157, %p158
      %p160 = scmp.ne.s32.totalorder %s152, %s155
      %p161 = scmp.eq.s32.totalorder %s13, 0
      %p162 = por %p160, %p161
      %p163 = scmp.ne.s32.totalorder %s152, %s155
      %p164 = scmp.eq.s32.totalorder %s18, 7
      %p165 = por %p163, %p164
      %p166 = scmp.ne.s32.totalorder %s155, %s156
      %p167 = scmp.eq.s32.totalorder %s18, 0
      %p168 = por %p166, %p167
      %p169 = scmp.ne.s32.totalorder %s155, %s156
      %p170 = scmp.eq.s32.totalorder %s19, 7
      %p171 = por %p169, %p170
      %p173 = scmp.ne.s32.totalorder %s156, %s172
      %p174 = scmp.eq.s32.totalorder %s19, 0
      %p175 = por %p173, %p174
      %p176 = scmp.le.s32.totalorder 1, %s13
      %p177 = scmp.lt.s32.totalorder %s13, 9
      %p178 = pnand %p176, %p177
      %p179 = pneg %p178
      // Predicated region
      $region9: #{tpu_custom_call.1} parent=5 // pred_check
        _
      $region10: #{tpu_custom_call.1} parent=5 // pred_check_branch
        %181 = sbr.rel (%p178) target = $region12
      $region11: #{tpu_custom_call.1} parent=5 // pred_region
        %s182 = ssub.s32 %s13, 1
        // Predicated region
        $region13: #{tpu_custom_call.1} parent=11 // pred_check
          %p183 = pneg %p88
        $region14: #{tpu_custom_call.1} parent=11 // pred_check_branch
          %185 = sbr.rel (%p183) target = $region16
        $region15: #{tpu_custom_call.1} parent=11 // pred_region
          %s186 = smul.u32 32, %s25
          %p187 = scmp.lt.s32.totalorder %s186, 31
          %s188 = scalar_select %p187, %s186, 31
          %p189 = scmp.lt.s32.totalorder %s24, 0
          %s190 = scalar_select %p189, %s24, 0
          %s191 = sadd.s32 %s190, %s188
          %s192 = smul.addr %s191, 4
          %s193 = scalar_lea.vmem %s1, %s192
          %s194 = smul.u32 32, %s25
        $region16: #{tpu_custom_call.1} parent=11 // pred_fallthru
          _
        // Predicated region
        $region17: #{tpu_custom_call.1} parent=11 // pred_check
          %p195 = pneg %p114
        $region18: #{tpu_custom_call.1} parent=11 // pred_check_branch
          %197 = sbr.rel (%p195) target = $region20
        $region19: #{tpu_custom_call.1} parent=11 // pred_region
          %p198 = scmp.lt.s32.totalorder %s24, 0
          %s199 = scalar_select %p198, %s24, 0
          %s200 = scalar_lea.vmem %s2, %s199
        $region20: #{tpu_custom_call.1} parent=11 // pred_fallthru
          _
        // Predicated region
        $region21: #{tpu_custom_call.1} parent=11 // pred_check
          %p201 = pneg %p140
        $region22: #{tpu_custom_call.1} parent=11 // pred_check_branch
          %203 = sbr.rel (%p201) target = $region24
        $region23: #{tpu_custom_call.1} parent=11 // pred_region
          %p204 = scmp.lt.s32.totalorder %s24, 0
          %s205 = scalar_select %p204, %s24, 0
          %s206 = scalar_lea.vmem %s3, %s205
        $region24: #{tpu_custom_call.1} parent=11 // pred_fallthru
          _
      $region12: #{tpu_custom_call.1} parent=5 // pred_fallthru
        _
      %p207 = scmp.lt.s32.totalorder %s13, 8
      // Predicated region
      $region25: #{tpu_custom_call.1} parent=5 // pred_check
        %p208 = pneg %p207
      $region26: #{tpu_custom_call.1} parent=5 // pred_check_branch
        %210 = sbr.rel (%p208) target = $region28
      $region27: #{tpu_custom_call.1} parent=5 // pred_region
        // Predicated region
        $region29: #{tpu_custom_call.1} parent=27 // pred_check
          %p211 = pneg %p54
        $region30: #{tpu_custom_call.1} parent=27 // pred_check_branch
          %213 = sbr.rel (%p211) target = $region32
        $region31: #{tpu_custom_call.1} parent=27 // pred_region
          %s214 = sand.u32 %s44, 1
          %s215 = scalar_lea.sflag [#allocation4], %s214
          %s216 = sand.u32 %s44, 1
          %s217 = smul.addr %s216, 256
          %s218 = scalar_lea.vmem [#allocation3], %s217
          %s219 = smul.u32 32, %s20
          %s220 = smul.u32 2, %s22
          %s222 = ssub.s32 4096, 4096
          %223 = vsyncadd %s215, %s222
          %s224 = smul.addr %s219, 2
          %s225 = sadd.s32 %s220, %s224
          %s226 = smul.addr %s225, 64
          %s227 = scalar_lea.hbm %s0, %s226
          %s228 = sshll.u32 %s218, 4
          %s229 = int_to_ptr.vmem [resolvable:$true] %s228
          %234 = dma.hbm_to_vmem [thread:$0]  %s227, 4096, %s229, %s215, 128, 128, 8
        $region32: #{tpu_custom_call.1} parent=27 // pred_fallthru
          _
      $region28: #{tpu_custom_call.1} parent=5 // pred_fallthru
        _
      %p235 = scmp.le.s32.totalorder 1, %s13
      %p236 = scmp.lt.s32.totalorder %s13, 9
      %p237 = pnand %p235, %p236
      %p238 = pneg %p237
      // Predicated region
      $region33: #{tpu_custom_call.1} parent=5 // pred_check
        _
      $region34: #{tpu_custom_call.1} parent=5 // pred_check_branch
        %240 = sbr.rel (%p237) target = $region36
      $region35: #{tpu_custom_call.1} parent=5 // pred_region
        %s241 = ssub.s32 %s13, 1
        %s242 = sand.u32 %s47, 1
        %s243 = scalar_lea.sflag [#allocation4], %s242
        %s244 = sand.u32 %s47, 1
        %s245 = smul.addr %s244, 256
        %s246 = scalar_lea.vmem [#allocation3], %s245
        // Predicated region
        $region37: #{tpu_custom_call.1} parent=35 // pred_check
          %p247 = pneg %p60
        $region38: #{tpu_custom_call.1} parent=35 // pred_check_branch
          %249 = sbr.rel (%p247) target = $region40
        $region39: #{tpu_custom_call.1} parent=35 // pred_region
          %250 = dma.done %s243, 4096
        $region40: #{tpu_custom_call.1} parent=35 // pred_fallthru
          _
        %s251 = sand.u32 %s47, 1
        %s252 = scalar_lea.sflag [#allocation4], %s251
        %s253 = sand.u32 %s47, 1
        %s254 = smul.addr %s253, 256
        %s255 = scalar_lea.vmem [#allocation3], %s254
        %p256 = pneg %p60
        %p257 = pneg %p57
        %s258 = smul.u32 32, %s25
        %p259 = scmp.lt.s32.totalorder %s258, 31
        %s260 = scalar_select %p259, %s258, 31
        %p261 = scmp.lt.s32.totalorder %s24, 0
        %s262 = scalar_select %p261, %s24, 0
        %s263 = sadd.s32 %s262, %s260
        %s264 = smul.addr %s263, 4
        %s265 = scalar_lea.vmem %s1, %s264
        %p266 = pneg %p88
        %p267 = pneg %p85
        %p268 = scmp.lt.s32.totalorder %s24, 0
        %s269 = scalar_select %p268, %s24, 0
        %s270 = scalar_lea.vmem %s2, %s269
        %p271 = pneg %p114
        %p272 = pneg %p111
        %p273 = scmp.lt.s32.totalorder %s24, 0
        %s274 = scalar_select %p273, %s24, 0
        %s275 = scalar_lea.vmem %s3, %s274
        %p276 = pneg %p140
        %p277 = pneg %p137
        %p278 = pneg %p168
        %p279 = pneg %p165
        %s280 = smul.u32 32, %s23
        %p281 = scmp.lt.s32.totalorder %s280, 255
        %s282 = scalar_select %p281, %s280, 255
        %p283 = scmp.lt.s32.totalorder %s24, 0
        %s284 = scalar_select %p283, %s24, 0
        %s285 = sadd.s32 %s284, %s282
        %s286 = smul.addr %s285, 4
        %s287 = scalar_lea.vmem %s4, %s286
        %s288 = smul.u32 32, %s23
        %s289 = smul.u32 2, %s25
        %s290 = smul.u32 32, %s25
        %p291 = scmp.lt.s32.totalorder %s290, 31
        %s292 = scalar_select %p291, %s290, 31
        %p293 = scmp.lt.s32.totalorder %s24, 0
        %s294 = scalar_select %p293, %s24, 0
        %s295 = sadd.s32 %s294, %s292
        %s296 = smul.addr %s295, 4
        %s297 = scalar_lea.vmem %s1, %s296
        %s298 = smul.u32 32, %s25
        %p299 = scmp.lt.s32.totalorder %s24, 0
        %s300 = scalar_select %p299, %s24, 0
        %s301 = scalar_lea.vmem %s2, %s300
        %p302 = scmp.lt.s32.totalorder %s24, 0
        %s303 = scalar_select %p302, %s24, 0
        %s304 = scalar_lea.vmem %s3, %s303
        %s305 = smul.u32 32, %s23
        %p306 = scmp.lt.s32.totalorder %s305, 255
        %s307 = scalar_select %p306, %s305, 255
        %p308 = scmp.lt.s32.totalorder %s24, 0
        %s309 = scalar_select %p308, %s24, 0
        %s310 = sadd.s32 %s309, %s307
        %s311 = smul.addr %s310, 4
        %s312 = scalar_lea.vmem %s4, %s311
        %s313 = smul.u32 32, %s23
        %p315 = scmp.eq.s32.totalorder %s25, 0
        // Predicated region
        $region41: #{tpu_custom_call.1} parent=35 // pred_check
          %p316 = pneg %p315
        $region42: #{tpu_custom_call.1} parent=35 // pred_check_branch
          %318 = sbr.rel (%p316) target = $region44
        $region43: #{tpu_custom_call.1} parent=35 // pred_region
          %vm319 = vcmask 523264
          %320 = vst.msk [vmem:[#allocation2] sm:$0xff] %vm319, 0.0
          %321 = vst.msk [vmem:[#allocation2 + $0x8] sm:$0xff] %vm319, 0.0
          %322 = vst.msk [vmem:[#allocation2 + $0x10] sm:$0xff] %vm319, 0.0
          %323 = vst.msk [vmem:[#allocation2 + $0x18] sm:$0xff] %vm319, 0.0
          %324 = vst.msk [vmem:[#allocation2 + $0x20] sm:$0xff] %vm319, 0.0
          %325 = vst.msk [vmem:[#allocation2 + $0x28] sm:$0xff] %vm319, 0.0
          %326 = vst.msk [vmem:[#allocation2 + $0x30] sm:$0xff] %vm319, 0.0
          %327 = vst.msk [vmem:[#allocation2 + $0x38] sm:$0xff] %vm319, 0.0
          %328 = vst.msk [vmem:[#allocation2 + $0x40] sm:$0xff] %vm319, 0.0
          %329 = vst.msk [vmem:[#allocation2 + $0x48] sm:$0xff] %vm319, 0.0
          %330 = vst.msk [vmem:[#allocation2 + $0x50] sm:$0xff] %vm319, 0.0
          %331 = vst.msk [vmem:[#allocation2 + $0x58] sm:$0xff] %vm319, 0.0
          %332 = vst.msk [vmem:[#allocation2 + $0x60] sm:$0xff] %vm319, 0.0
          %333 = vst.msk [vmem:[#allocation2 + $0x68] sm:$0xff] %vm319, 0.0
          %334 = vst.msk [vmem:[#allocation2 + $0x70] sm:$0xff] %vm319, 0.0
          %335 = vst.msk [vmem:[#allocation2 + $0x78] sm:$0xff] %vm319, 0.0
          %336 = vst.msk [vmem:[#allocation2 + $0x80] sm:$0xff] %vm319, 0.0
          %337 = vst.msk [vmem:[#allocation2 + $0x88] sm:$0xff] %vm319, 0.0
          %338 = vst.msk [vmem:[#allocation2 + $0x90] sm:$0xff] %vm319, 0.0
          %339 = vst.msk [vmem:[#allocation2 + $0x98] sm:$0xff] %vm319, 0.0
          %340 = vst.msk [vmem:[#allocation2 + $0xa0] sm:$0xff] %vm319, 0.0
          %341 = vst.msk [vmem:[#allocation2 + $0xa8] sm:$0xff] %vm319, 0.0
          %342 = vst.msk [vmem:[#allocation2 + $0xb0] sm:$0xff] %vm319, 0.0
          %343 = vst.msk [vmem:[#allocation2 + $0xb8] sm:$0xff] %vm319, 0.0
          %344 = vst.msk [vmem:[#allocation2 + $0xc0] sm:$0xff] %vm319, 0.0
          %345 = vst.msk [vmem:[#allocation2 + $0xc8] sm:$0xff] %vm319, 0.0
          %346 = vst.msk [vmem:[#allocation2 + $0xd0] sm:$0xff] %vm319, 0.0
          %347 = vst.msk [vmem:[#allocation2 + $0xd8] sm:$0xff] %vm319, 0.0
          %348 = vst.msk [vmem:[#allocation2 + $0xe0] sm:$0xff] %vm319, 0.0
          %349 = vst.msk [vmem:[#allocation2 + $0xe8] sm:$0xff] %vm319, 0.0
          %350 = vst.msk [vmem:[#allocation2 + $0xf0] sm:$0xff] %vm319, 0.0
          %351 = vst.msk [vmem:[#allocation2 + $0xf8] sm:$0xff] %vm319, 0.0
        $region44: #{tpu_custom_call.1} parent=35 // pred_fallthru
          _
        %v352 = vld [vmem:[#allocation2] sm:$0xff]
        %v353 = vld [vmem:[#allocation2 + $0x8] sm:$0xff]
        %v354 = vld [vmem:[#allocation2 + $0x10] sm:$0xff]
        %v355 = vld [vmem:[#allocation2 + $0x18] sm:$0xff]
        %v356 = vld [vmem:[#allocation2 + $0x20] sm:$0xff]
        %v357 = vld [vmem:[#allocation2 + $0x28] sm:$0xff]
        %v358 = vld [vmem:[#allocation2 + $0x30] sm:$0xff]
        %v359 = vld [vmem:[#allocation2 + $0x38] sm:$0xff]
        %v360 = vld [vmem:[#allocation2 + $0x40] sm:$0xff]
        %v361 = vld [vmem:[#allocation2 + $0x48] sm:$0xff]
        %v362 = vld [vmem:[#allocation2 + $0x50] sm:$0xff]
        %v363 = vld [vmem:[#allocation2 + $0x58] sm:$0xff]
        %v364 = vld [vmem:[#allocation2 + $0x60] sm:$0xff]
        %v365 = vld [vmem:[#allocation2 + $0x68] sm:$0xff]
        %v366 = vld [vmem:[#allocation2 + $0x70] sm:$0xff]
        %v367 = vld [vmem:[#allocation2 + $0x78] sm:$0xff]
        %v368 = vld [vmem:[#allocation2 + $0x80] sm:$0xff]
        %v369 = vld [vmem:[#allocation2 + $0x88] sm:$0xff]
        %v370 = vld [vmem:[#allocation2 + $0x90] sm:$0xff]
        %v371 = vld [vmem:[#allocation2 + $0x98] sm:$0xff]
        %v372 = vld [vmem:[#allocation2 + $0xa0] sm:$0xff]
        %v373 = vld [vmem:[#allocation2 + $0xa8] sm:$0xff]
        %v374 = vld [vmem:[#allocation2 + $0xb0] sm:$0xff]
        %v375 = vld [vmem:[#allocation2 + $0xb8] sm:$0xff]
        %v376 = vld [vmem:[#allocation2 + $0xc0] sm:$0xff]
        %v377 = vld [vmem:[#allocation2 + $0xc8] sm:$0xff]
        %v378 = vld [vmem:[#allocation2 + $0xd0] sm:$0xff]
        %v379 = vld [vmem:[#allocation2 + $0xd8] sm:$0xff]
        %v380 = vld [vmem:[#allocation2 + $0xe0] sm:$0xff]
        %v381 = vld [vmem:[#allocation2 + $0xe8] sm:$0xff]
        %v382 = vld [vmem:[#allocation2 + $0xf0] sm:$0xff]
        %v383 = vld [vmem:[#allocation2 + $0xf8] sm:$0xff]
        %v384 = vld [vmem:[%s246] sm:$0xff]
        %v385 = vld [vmem:[%s246 + $0x8] sm:$0xff]
        %v386 = vld [vmem:[%s246 + $0x10] sm:$0xff]
        %v387 = vld [vmem:[%s246 + $0x18] sm:$0xff]
        %v388 = vld [vmem:[%s246 + $0x20] sm:$0xff]
        %v389 = vld [vmem:[%s246 + $0x28] sm:$0xff]
        %v390 = vld [vmem:[%s246 + $0x30] sm:$0xff]
        %v391 = vld [vmem:[%s246 + $0x38] sm:$0xff]
        %v392 = vld [vmem:[%s246 + $0x40] sm:$0xff]
        %v393 = vld [vmem:[%s246 + $0x48] sm:$0xff]
        %v394 = vld [vmem:[%s246 + $0x50] sm:$0xff]
        %v395 = vld [vmem:[%s246 + $0x58] sm:$0xff]
        %v396 = vld [vmem:[%s246 + $0x60] sm:$0xff]
        %v397 = vld [vmem:[%s246 + $0x68] sm:$0xff]
        %v398 = vld [vmem:[%s246 + $0x70] sm:$0xff]
        %v399 = vld [vmem:[%s246 + $0x78] sm:$0xff]
        %v400 = vld [vmem:[%s246 + $0x80] sm:$0xff]
        %v401 = vld [vmem:[%s246 + $0x88] sm:$0xff]
        %v402 = vld [vmem:[%s246 + $0x90] sm:$0xff]
        %v403 = vld [vmem:[%s246 + $0x98] sm:$0xff]
        %v404 = vld [vmem:[%s246 + $0xa0] sm:$0xff]
        %v405 = vld [vmem:[%s246 + $0xa8] sm:$0xff]
        %v406 = vld [vmem:[%s246 + $0xb0] sm:$0xff]
        %v407 = vld [vmem:[%s246 + $0xb8] sm:$0xff]
        %v408 = vld [vmem:[%s246 + $0xc0] sm:$0xff]
        %v409 = vld [vmem:[%s246 + $0xc8] sm:$0xff]
        %v410 = vld [vmem:[%s246 + $0xd0] sm:$0xff]
        %v411 = vld [vmem:[%s246 + $0xd8] sm:$0xff]
        %v412 = vld [vmem:[%s246 + $0xe0] sm:$0xff]
        %v413 = vld [vmem:[%s246 + $0xe8] sm:$0xff]
        %v414 = vld [vmem:[%s246 + $0xf0] sm:$0xff]
        %v415 = vld [vmem:[%s246 + $0xf8] sm:$0xff]
        %v416 = vld [vmem:[%s297] sm:$0xf]
        %v417 = vld [vmem:[%s297 + $0x4] sm:$0xf]
        %v418 = vld [vmem:[%s297 + $0x8] sm:$0xf]
        %v419 = vld [vmem:[%s297 + $0xc] sm:$0xf]
        %v420 = vld [vmem:[%s297 + $0x10] sm:$0xf]
        %v421 = vld [vmem:[%s297 + $0x14] sm:$0xf]
        %v422 = vld [vmem:[%s297 + $0x18] sm:$0xf]
        %v423 = vld [vmem:[%s297 + $0x1c] sm:$0xf]
        %v424 = vld [vmem:[%s297 + $0x20] sm:$0xf]
        %v425 = vld [vmem:[%s297 + $0x24] sm:$0xf]
        %v426 = vld [vmem:[%s297 + $0x28] sm:$0xf]
        %v427 = vld [vmem:[%s297 + $0x2c] sm:$0xf]
        %v428 = vld [vmem:[%s297 + $0x30] sm:$0xf]
        %v429 = vld [vmem:[%s297 + $0x34] sm:$0xf]
        %v430 = vld [vmem:[%s297 + $0x38] sm:$0xf]
        %v431 = vld [vmem:[%s297 + $0x3c] sm:$0xf]
        %v432 = vld [vmem:[%s297 + $0x40] sm:$0xf]
        %v433 = vld [vmem:[%s297 + $0x44] sm:$0xf]
        %v434 = vld [vmem:[%s297 + $0x48] sm:$0xf]
        %v435 = vld [vmem:[%s297 + $0x4c] sm:$0xf]
        %v436 = vld [vmem:[%s297 + $0x50] sm:$0xf]
        %v437 = vld [vmem:[%s297 + $0x54] sm:$0xf]
        %v438 = vld [vmem:[%s297 + $0x58] sm:$0xf]
        %v439 = vld [vmem:[%s297 + $0x5c] sm:$0xf]
        %v440 = vld [vmem:[%s297 + $0x60] sm:$0xf]
        %v441 = vld [vmem:[%s297 + $0x64] sm:$0xf]
        %v442 = vld [vmem:[%s297 + $0x68] sm:$0xf]
        %v443 = vld [vmem:[%s297 + $0x6c] sm:$0xf]
        %v444 = vld [vmem:[%s297 + $0x70] sm:$0xf]
        %v445 = vld [vmem:[%s297 + $0x74] sm:$0xf]
        %v446 = vld [vmem:[%s297 + $0x78] sm:$0xf]
        %v447 = vld [vmem:[%s297 + $0x7c] sm:$0xf]
        %v480 = vunpack.c.l.b16 %v384
        %v481 = vunpack.c.h.b16 %v384
        %v482 = vunpack.c.l.b16 %v385
        %v483 = vunpack.c.h.b16 %v385
        %v484 = vunpack.c.l.b16 %v386
        %v485 = vunpack.c.h.b16 %v386
        %v486 = vunpack.c.l.b16 %v387
        %v487 = vunpack.c.h.b16 %v387
        %v488 = vunpack.c.l.b16 %v388
        %v489 = vunpack.c.h.b16 %v388
        %v490 = vunpack.c.l.b16 %v389
        %v491 = vunpack.c.h.b16 %v389
        %v492 = vunpack.c.l.b16 %v390
        %v493 = vunpack.c.h.b16 %v390
        %v494 = vunpack.c.l.b16 %v391
        %v495 = vunpack.c.h.b16 %v391
        %v496 = vunpack.c.l.b16 %v392
        %v497 = vunpack.c.h.b16 %v392
        %v498 = vunpack.c.l.b16 %v393
        %v499 = vunpack.c.h.b16 %v393
        %v500 = vunpack.c.l.b16 %v394
        %v501 = vunpack.c.h.b16 %v394
        %v502 = vunpack.c.l.b16 %v395
        %v503 = vunpack.c.h.b16 %v395
        %v504 = vunpack.c.l.b16 %v396
        %v505 = vunpack.c.h.b16 %v396
        %v506 = vunpack.c.l.b16 %v397
        %v507 = vunpack.c.h.b16 %v397
        %v508 = vunpack.c.l.b16 %v398
        %v509 = vunpack.c.h.b16 %v398
        %v510 = vunpack.c.l.b16 %v399
        %v511 = vunpack.c.h.b16 %v399
        %v512 = vunpack.c.l.b16 %v400
        %v513 = vunpack.c.h.b16 %v400
        %v514 = vunpack.c.l.b16 %v401
        %v515 = vunpack.c.h.b16 %v401
        %v516 = vunpack.c.l.b16 %v402
        %v517 = vunpack.c.h.b16 %v402
        %v518 = vunpack.c.l.b16 %v403
        %v519 = vunpack.c.h.b16 %v403
        %v520 = vunpack.c.l.b16 %v404
        %v521 = vunpack.c.h.b16 %v404
        %v522 = vunpack.c.l.b16 %v405
        %v523 = vunpack.c.h.b16 %v405
        %v524 = vunpack.c.l.b16 %v406
        %v525 = vunpack.c.h.b16 %v406
        %v526 = vunpack.c.l.b16 %v407
        %v527 = vunpack.c.h.b16 %v407
        %v528 = vunpack.c.l.b16 %v408
        %v529 = vunpack.c.h.b16 %v408
        %v530 = vunpack.c.l.b16 %v409
        %v531 = vunpack.c.h.b16 %v409
        %v532 = vunpack.c.l.b16 %v410
        %v533 = vunpack.c.h.b16 %v410
        %v534 = vunpack.c.l.b16 %v411
        %v535 = vunpack.c.h.b16 %v411
        %v536 = vunpack.c.l.b16 %v412
        %v537 = vunpack.c.h.b16 %v412
        %v538 = vunpack.c.l.b16 %v413
        %v539 = vunpack.c.h.b16 %v413
        %v540 = vunpack.c.l.b16 %v414
        %v541 = vunpack.c.h.b16 %v414
        %v542 = vunpack.c.l.b16 %v415
        %v543 = vunpack.c.h.b16 %v415
        %v544 = vpack.c.b16 %v482, %v480
        %v545 = vpack.c.b16 %v483, %v481
        %v546 = vpack.c.b16 %v486, %v484
        %v547 = vpack.c.b16 %v487, %v485
        %v548 = vpack.c.b16 %v490, %v488
        %v549 = vpack.c.b16 %v491, %v489
        %v550 = vpack.c.b16 %v494, %v492
        %v551 = vpack.c.b16 %v495, %v493
        %v552 = vpack.c.b16 %v498, %v496
        %v553 = vpack.c.b16 %v499, %v497
        %v554 = vpack.c.b16 %v502, %v500
        %v555 = vpack.c.b16 %v503, %v501
        %v556 = vpack.c.b16 %v506, %v504
        %v557 = vpack.c.b16 %v507, %v505
        %v558 = vpack.c.b16 %v510, %v508
        %v559 = vpack.c.b16 %v511, %v509
        %v560 = vpack.c.b16 %v514, %v512
        %v561 = vpack.c.b16 %v515, %v513
        %v562 = vpack.c.b16 %v518, %v516
        %v563 = vpack.c.b16 %v519, %v517
        %v564 = vpack.c.b16 %v522, %v520
        %v565 = vpack.c.b16 %v523, %v521
        %v566 = vpack.c.b16 %v526, %v524
        %v567 = vpack.c.b16 %v527, %v525
        %v568 = vpack.c.b16 %v530, %v528
        %v569 = vpack.c.b16 %v531, %v529
        %v570 = vpack.c.b16 %v534, %v532
        %v571 = vpack.c.b16 %v535, %v533
        %v572 = vpack.c.b16 %v538, %v536
        %v573 = vpack.c.b16 %v539, %v537
        %v574 = vpack.c.b16 %v542, %v540
        %v575 = vpack.c.b16 %v543, %v541
        %v640 = vunpack.c.l.b16 %v416
        %v641 = vunpack.c.l.b16 %v417
        %v642 = vunpack.c.l.b16 %v418
        %v643 = vunpack.c.l.b16 %v419
        %v644 = vunpack.c.l.b16 %v420
        %v645 = vunpack.c.l.b16 %v421
        %v646 = vunpack.c.l.b16 %v422
        %v647 = vunpack.c.l.b16 %v423
        %v648 = vunpack.c.l.b16 %v424
        %v649 = vunpack.c.l.b16 %v425
        %v650 = vunpack.c.l.b16 %v426
        %v651 = vunpack.c.l.b16 %v427
        %v652 = vunpack.c.l.b16 %v428
        %v653 = vunpack.c.l.b16 %v429
        %v654 = vunpack.c.l.b16 %v430
        %v655 = vunpack.c.l.b16 %v431
        %v656 = vunpack.c.l.b16 %v432
        %v657 = vunpack.c.l.b16 %v433
        %v658 = vunpack.c.l.b16 %v434
        %v659 = vunpack.c.l.b16 %v435
        %v660 = vunpack.c.l.b16 %v436
        %v661 = vunpack.c.l.b16 %v437
        %v662 = vunpack.c.l.b16 %v438
        %v663 = vunpack.c.l.b16 %v439
        %v664 = vunpack.c.l.b16 %v440
        %v665 = vunpack.c.l.b16 %v441
        %v666 = vunpack.c.l.b16 %v442
        %v667 = vunpack.c.l.b16 %v443
        %v668 = vunpack.c.l.b16 %v444
        %v669 = vunpack.c.l.b16 %v445
        %v670 = vunpack.c.l.b16 %v446
        %v671 = vunpack.c.l.b16 %v447
        %v672 = vpack.c.b16 %v641, %v640
        %v673 = vpack.c.b16 %v643, %v642
        %v674 = vpack.c.b16 %v645, %v644
        %v675 = vpack.c.b16 %v647, %v646
        %v676 = vpack.c.b16 %v649, %v648
        %v677 = vpack.c.b16 %v651, %v650
        %v678 = vpack.c.b16 %v653, %v652
        %v679 = vpack.c.b16 %v655, %v654
        %v680 = vpack.c.b16 %v657, %v656
        %v681 = vpack.c.b16 %v659, %v658
        %v682 = vpack.c.b16 %v661, %v660
        %v683 = vpack.c.b16 %v663, %v662
        %v684 = vpack.c.b16 %v665, %v664
        %v685 = vpack.c.b16 %v667, %v666
        %v686 = vpack.c.b16 %v669, %v668
        %v687 = vpack.c.b16 %v671, %v670
        %704 = vmatprep.subr.bf16.mxu0 0
        %705 = vmatpush1.bf16.msra.mxu0 %v672
        %706 = vmatprep.subr.bf16.mxu0 0
        %707 = vmatpush1.bf16.msra.mxu0 %v673
        %708 = vmatprep.subr.bf16.mxu0 0
        %709 = vmatpush1.bf16.msra.mxu0 %v674
        %710 = vmatprep.subr.bf16.mxu0 0
        %711 = vmatpush1.bf16.msra.mxu0 %v675
        %712 = vmatprep.subr.bf16.mxu0 0
        %713 = vmatpush1.bf16.msra.mxu0 %v676
        %714 = vmatprep.subr.bf16.mxu0 0
        %715 = vmatpush1.bf16.msra.mxu0 %v677
        %716 = vmatprep.subr.bf16.mxu0 0
        %717 = vmatpush1.bf16.msra.mxu0 %v678
        %718 = vmatprep.subr.bf16.mxu0 0
        %719 = vmatpush1.bf16.msra.mxu0 %v679
        %720 = vmatprep.subr.bf16.mxu0 0
        %721 = vmatpush1.bf16.msra.mxu0 %v680
        %722 = vmatprep.subr.bf16.mxu0 0
        %723 = vmatpush1.bf16.msra.mxu0 %v681
        %724 = vmatprep.subr.bf16.mxu0 0
        %725 = vmatpush1.bf16.msra.mxu0 %v682
        %726 = vmatprep.subr.bf16.mxu0 0
        %727 = vmatpush1.bf16.msra.mxu0 %v683
        %728 = vmatprep.subr.bf16.mxu0 0
        %729 = vmatpush1.bf16.msra.mxu0 %v684
        %730 = vmatprep.subr.bf16.mxu0 0
        %731 = vmatpush1.bf16.msra.mxu0 %v685
        %732 = vmatprep.subr.bf16.mxu0 0
        %733 = vmatpush1.bf16.msra.mxu0 %v686
        %734 = vmatprep.subr.bf16.mxu0 0
        %735 = vmatpush1.bf16.msra.mxu0 %v687
        %736 = vmatprep.mubr.bf16.mxu0 %v545
        %737 = vmatmul.mubr.bf16.gmra.mrb[0].mxu0 %v544
        %v738 = vpop.f32.mrb[0].mxu0
        %v739 = vadd.f32 0.0, %v738
        %v740 = vpop.f32.mrb[0].mxu0
        %v741 = vpop.f32.mrb[0].mxu0
        %v742 = vadd.f32 0.0, %v741
        %v743 = vpop.f32.mrb[0].mxu0
        %744 = vmatprep.mubr.bf16.mxu0 %v547
        %745 = vmatmul.mubr.bf16.gmra.mrb[0].mxu0 %v546
        %v746 = vpop.f32.mrb[0].mxu0
        %v747 = vadd.f32 0.0, %v746
        %v748 = vpop.f32.mrb[0].mxu0
        %v749 = vpop.f32.mrb[0].mxu0
        %v750 = vadd.f32 0.0, %v749
        %v751 = vpop.f32.mrb[0].mxu0
        %752 = vmatprep.mubr.bf16.mxu0 %v549
        %753 = vmatmul.mubr.bf16.gmra.mrb[0].mxu0 %v548
        %v754 = vpop.f32.mrb[0].mxu0
        %v755 = vadd.f32 0.0, %v754
        %v756 = vpop.f32.mrb[0].mxu0
        %v757 = vpop.f32.mrb[0].mxu0
        %v758 = vadd.f32 0.0, %v757
        %v759 = vpop.f32.mrb[0].mxu0
        %760 = vmatprep.mubr.bf16.mxu0 %v551
        %761 = vmatmul.mubr.bf16.gmra.mrb[0].mxu0 %v550
        %v762 = vpop.f32.mrb[0].mxu0
        %v763 = vadd.f32 0.0, %v762
        %v764 = vpop.f32.mrb[0].mxu0
        %v765 = vpop.f32.mrb[0].mxu0
        %v766 = vadd.f32 0.0, %v765
        %v767 = vpop.f32.mrb[0].mxu0
        %768 = vmatprep.mubr.bf16.mxu0 %v553
        %769 = vmatmul.mubr.bf16.gmra.mrb[0].mxu0 %v552
        %v770 = vpop.f32.mrb[0].mxu0
        %v771 = vadd.f32 0.0, %v770
        %v772 = vpop.f32.mrb[0].mxu0
        %v773 = vpop.f32.mrb[0].mxu0
        %v774 = vadd.f32 0.0, %v773
        %v775 = vpop.f32.mrb[0].mxu0
        %776 = vmatprep.mubr.bf16.mxu0 %v555
        %777 = vmatmul.mubr.bf16.gmra.mrb[0].mxu0 %v554
        %v778 = vpop.f32.mrb[0].mxu0
        %v779 = vadd.f32 0.0, %v778
        %v780 = vpop.f32.mrb[0].mxu0
        %v781 = vpop.f32.mrb[0].mxu0
        %v782 = vadd.f32 0.0, %v781
        %v783 = vpop.f32.mrb[0].mxu0
        %784 = vmatprep.mubr.bf16.mxu0 %v557
        %785 = vmatmul.mubr.bf16.gmra.mrb[0].mxu0 %v556
        %v786 = vpop.f32.mrb[0].mxu0
        %v787 = vadd.f32 0.0, %v786
        %v788 = vpop.f32.mrb[0].mxu0
        %v789 = vpop.f32.mrb[0].mxu0
        %v790 = vadd.f32 0.0, %v789
        %v791 = vpop.f32.mrb[0].mxu0
        %792 = vmatprep.mubr.bf16.mxu0 %v559
        %793 = vmatmul.mubr.bf16.gmra.mrb[0].mxu0 %v558
        %v794 = vpop.f32.mrb[0].mxu0
        %v795 = vadd.f32 0.0, %v794
        %v796 = vpop.f32.mrb[0].mxu0
        %v797 = vpop.f32.mrb[0].mxu0
        %v798 = vadd.f32 0.0, %v797
        %v799 = vpop.f32.mrb[0].mxu0
        %800 = vmatprep.mubr.bf16.mxu0 %v561
        %801 = vmatmul.mubr.bf16.gmra.mrb[0].mxu0 %v560
        %v802 = vpop.f32.mrb[0].mxu0
        %v803 = vadd.f32 0.0, %v802
        %v804 = vpop.f32.mrb[0].mxu0
        %v805 = vpop.f32.mrb[0].mxu0
        %v806 = vadd.f32 0.0, %v805
        %v807 = vpop.f32.mrb[0].mxu0
        %808 = vmatprep.mubr.bf16.mxu0 %v563
        %809 = vmatmul.mubr.bf16.gmra.mrb[0].mxu0 %v562
        %v810 = vpop.f32.mrb[0].mxu0
        %v811 = vadd.f32 0.0, %v810
        %v812 = vpop.f32.mrb[0].mxu0
        %v813 = vpop.f32.mrb[0].mxu0
        %v814 = vadd.f32 0.0, %v813
        %v815 = vpop.f32.mrb[0].mxu0
        %816 = vmatprep.mubr.bf16.mxu0 %v565
        %817 = vmatmul.mubr.bf16.gmra.mrb[0].mxu0 %v564
        %v818 = vpop.f32.mrb[0].mxu0
        %v819 = vadd.f32 0.0, %v818
        %v820 = vpop.f32.mrb[0].mxu0
        %v821 = vpop.f32.mrb[0].mxu0
        %v822 = vadd.f32 0.0, %v821
        %v823 = vpop.f32.mrb[0].mxu0
        %824 = vmatprep.mubr.bf16.mxu0 %v567
        %825 = vmatmul.mubr.bf16.gmra.mrb[0].mxu0 %v566
        %v826 = vpop.f32.mrb[0].mxu0
        %v827 = vadd.f32 0.0, %v826
        %v828 = vpop.f32.mrb[0].mxu0
        %v829 = vpop.f32.mrb[0].mxu0
        %v830 = vadd.f32 0.0, %v829
        %v831 = vpop.f32.mrb[0].mxu0
        %832 = vmatprep.mubr.bf16.mxu0 %v569
        %833 = vmatmul.mubr.bf16.gmra.mrb[0].mxu0 %v568
        %v834 = vpop.f32.mrb[0].mxu0
        %v835 = vadd.f32 0.0, %v834
        %v836 = vpop.f32.mrb[0].mxu0
        %v837 = vpop.f32.mrb[0].mxu0
        %v838 = vadd.f32 0.0, %v837
        %v839 = vpop.f32.mrb[0].mxu0
        %840 = vmatprep.mubr.bf16.mxu0 %v571
        %841 = vmatmul.mubr.bf16.gmra.mrb[0].mxu0 %v570
        %v842 = vpop.f32.mrb[0].mxu0
        %v843 = vadd.f32 0.0, %v842
        %v844 = vpop.f32.mrb[0].mxu0
        %v845 = vpop.f32.mrb[0].mxu0
        %v846 = vadd.f32 0.0, %v845
        %v847 = vpop.f32.mrb[0].mxu0
        %848 = vmatprep.mubr.bf16.mxu0 %v573
        %849 = vmatmul.mubr.bf16.gmra.mrb[0].mxu0 %v572
        %v850 = vpop.f32.mrb[0].mxu0
        %v851 = vadd.f32 0.0, %v850
        %v852 = vpop.f32.mrb[0].mxu0
        %v853 = vpop.f32.mrb[0].mxu0
        %v854 = vadd.f32 0.0, %v853
        %v855 = vpop.f32.mrb[0].mxu0
        %856 = vmatprep.mubr.bf16.mxu0 %v575
        %857 = vmatmul.mubr.bf16.gmra.mrb[0].mxu0 %v574
        %v858 = vpop.f32.mrb[0].mxu0
        %v859 = vadd.f32 0.0, %v858
        %v860 = vpop.f32.mrb[0].mxu0
        %v861 = vpop.f32.mrb[0].mxu0
        %v862 = vadd.f32 0.0, %v861
        %v863 = vpop.f32.mrb[0].mxu0
        %864 = vdwg.mxu0
        %v865 = vadd.f32 %v352, %v739
        %v866 = vadd.f32 %v353, %v742
        %v867 = vadd.f32 %v354, %v747
        %v868 = vadd.f32 %v355, %v750
        %v869 = vadd.f32 %v356, %v755
        %v870 = vadd.f32 %v357, %v758
        %v871 = vadd.f32 %v358, %v763
        %v872 = vadd.f32 %v359, %v766
        %v873 = vadd.f32 %v360, %v771
        %v874 = vadd.f32 %v361, %v774
        %v875 = vadd.f32 %v362, %v779
        %v876 = vadd.f32 %v363, %v782
        %v877 = vadd.f32 %v364, %v787
        %v878 = vadd.f32 %v365, %v790
        %v879 = vadd.f32 %v366, %v795
        %v880 = vadd.f32 %v367, %v798
        %v881 = vadd.f32 %v368, %v803
        %v882 = vadd.f32 %v369, %v806
        %v883 = vadd.f32 %v370, %v811
        %v884 = vadd.f32 %v371, %v814
        %v885 = vadd.f32 %v372, %v819
        %v886 = vadd.f32 %v373, %v822
        %v887 = vadd.f32 %v374, %v827
        %v888 = vadd.f32 %v375, %v830
        %v889 = vadd.f32 %v376, %v835
        %v890 = vadd.f32 %v377, %v838
        %v891 = vadd.f32 %v378, %v843
        %v892 = vadd.f32 %v379, %v846
        %v893 = vadd.f32 %v380, %v851
        %v894 = vadd.f32 %v381, %v854
        %v895 = vadd.f32 %v382, %v859
        %v896 = vadd.f32 %v383, %v862
        %vm897 = vcmask 523264
        %898 = vst.msk [vmem:[#allocation2] sm:$0xff] %vm897, %v865
        %899 = vst.msk [vmem:[#allocation2 + $0x8] sm:$0xff] %vm897, %v866
        %900 = vst.msk [vmem:[#allocation2 + $0x10] sm:$0xff] %vm897, %v867
        %901 = vst.msk [vmem:[#allocation2 + $0x18] sm:$0xff] %vm897, %v868
        %902 = vst.msk [vmem:[#allocation2 + $0x20] sm:$0xff] %vm897, %v869
        %903 = vst.msk [vmem:[#allocation2 + $0x28] sm:$0xff] %vm897, %v870
        %904 = vst.msk [vmem:[#allocation2 + $0x30] sm:$0xff] %vm897, %v871
        %905 = vst.msk [vmem:[#allocation2 + $0x38] sm:$0xff] %vm897, %v872
        %906 = vst.msk [vmem:[#allocation2 + $0x40] sm:$0xff] %vm897, %v873
        %907 = vst.msk [vmem:[#allocation2 + $0x48] sm:$0xff] %vm897, %v874
        %908 = vst.msk [vmem:[#allocation2 + $0x50] sm:$0xff] %vm897, %v875
        %909 = vst.msk [vmem:[#allocation2 + $0x58] sm:$0xff] %vm897, %v876
        %910 = vst.msk [vmem:[#allocation2 + $0x60] sm:$0xff] %vm897, %v877
        %911 = vst.msk [vmem:[#allocation2 + $0x68] sm:$0xff] %vm897, %v878
        %912 = vst.msk [vmem:[#allocation2 + $0x70] sm:$0xff] %vm897, %v879
        %913 = vst.msk [vmem:[#allocation2 + $0x78] sm:$0xff] %vm897, %v880
        %914 = vst.msk [vmem:[#allocation2 + $0x80] sm:$0xff] %vm897, %v881
        %915 = vst.msk [vmem:[#allocation2 + $0x88] sm:$0xff] %vm897, %v882
        %916 = vst.msk [vmem:[#allocation2 + $0x90] sm:$0xff] %vm897, %v883
        %917 = vst.msk [vmem:[#allocation2 + $0x98] sm:$0xff] %vm897, %v884
        %918 = vst.msk [vmem:[#allocation2 + $0xa0] sm:$0xff] %vm897, %v885
        %919 = vst.msk [vmem:[#allocation2 + $0xa8] sm:$0xff] %vm897, %v886
        %920 = vst.msk [vmem:[#allocation2 + $0xb0] sm:$0xff] %vm897, %v887
        %921 = vst.msk [vmem:[#allocation2 + $0xb8] sm:$0xff] %vm897, %v888
        %922 = vst.msk [vmem:[#allocation2 + $0xc0] sm:$0xff] %vm897, %v889
        %923 = vst.msk [vmem:[#allocation2 + $0xc8] sm:$0xff] %vm897, %v890
        %924 = vst.msk [vmem:[#allocation2 + $0xd0] sm:$0xff] %vm897, %v891
        %925 = vst.msk [vmem:[#allocation2 + $0xd8] sm:$0xff] %vm897, %v892
        %926 = vst.msk [vmem:[#allocation2 + $0xe0] sm:$0xff] %vm897, %v893
        %927 = vst.msk [vmem:[#allocation2 + $0xe8] sm:$0xff] %vm897, %v894
        %928 = vst.msk [vmem:[#allocation2 + $0xf0] sm:$0xff] %vm897, %v895
        %929 = vst.msk [vmem:[#allocation2 + $0xf8] sm:$0xff] %vm897, %v896
        // Predicated region
        $region45: #{tpu_custom_call.1} parent=35 // pred_check
          %p930 = pneg %p315
        $region46: #{tpu_custom_call.1} parent=35 // pred_check_branch
          %932 = sbr.rel (%p930) target = $region48
        $region47: #{tpu_custom_call.1} parent=35 // pred_region
          %v933 = vld [vmem:[#allocation2] sm:$0xff]
          %v934 = vld [vmem:[#allocation2 + $0x8] sm:$0xff]
          %v935 = vld [vmem:[#allocation2 + $0x10] sm:$0xff]
          %v936 = vld [vmem:[#allocation2 + $0x18] sm:$0xff]
          %v937 = vld [vmem:[#allocation2 + $0x20] sm:$0xff]
          %v938 = vld [vmem:[#allocation2 + $0x28] sm:$0xff]
          %v939 = vld [vmem:[#allocation2 + $0x30] sm:$0xff]
          %v940 = vld [vmem:[#allocation2 + $0x38] sm:$0xff]
          %v941 = vld [vmem:[#allocation2 + $0x40] sm:$0xff]
          %v942 = vld [vmem:[#allocation2 + $0x48] sm:$0xff]
          %v943 = vld [vmem:[#allocation2 + $0x50] sm:$0xff]
          %v944 = vld [vmem:[#allocation2 + $0x58] sm:$0xff]
          %v945 = vld [vmem:[#allocation2 + $0x60] sm:$0xff]
          %v946 = vld [vmem:[#allocation2 + $0x68] sm:$0xff]
          %v947 = vld [vmem:[#allocation2 + $0x70] sm:$0xff]
          %v948 = vld [vmem:[#allocation2 + $0x78] sm:$0xff]
          %v949 = vld [vmem:[#allocation2 + $0x80] sm:$0xff]
          %v950 = vld [vmem:[#allocation2 + $0x88] sm:$0xff]
          %v951 = vld [vmem:[#allocation2 + $0x90] sm:$0xff]
          %v952 = vld [vmem:[#allocation2 + $0x98] sm:$0xff]
          %v953 = vld [vmem:[#allocation2 + $0xa0] sm:$0xff]
          %v954 = vld [vmem:[#allocation2 + $0xa8] sm:$0xff]
          %v955 = vld [vmem:[#allocation2 + $0xb0] sm:$0xff]
          %v956 = vld [vmem:[#allocation2 + $0xb8] sm:$0xff]
          %v957 = vld [vmem:[#allocation2 + $0xc0] sm:$0xff]
          %v958 = vld [vmem:[#allocation2 + $0xc8] sm:$0xff]
          %v959 = vld [vmem:[#allocation2 + $0xd0] sm:$0xff]
          %v960 = vld [vmem:[#allocation2 + $0xd8] sm:$0xff]
          %v961 = vld [vmem:[#allocation2 + $0xe0] sm:$0xff]
          %v962 = vld [vmem:[#allocation2 + $0xe8] sm:$0xff]
          %v963 = vld [vmem:[#allocation2 + $0xf0] sm:$0xff]
          %v964 = vld [vmem:[#allocation2 + $0xf8] sm:$0xff]
          %v965 = vld [vmem:[%s301] sm:$0x1]
          %v967 = vlaneseq
          %v968 = vshrl.u32 %v967, 7
          %v969 = vsub.s32 0, %v968
          %v970 = vrot.slane %v965, %v969
          %v972 = vmul.f32 %v933, %v970
          %v973 = vmul.f32 %v934, %v970
          %v974 = vmul.f32 %v935, %v970
          %v975 = vmul.f32 %v936, %v970
          %v976 = vmul.f32 %v937, %v970
          %v977 = vmul.f32 %v938, %v970
          %v978 = vmul.f32 %v939, %v970
          %v979 = vmul.f32 %v940, %v970
          %v980 = vmul.f32 %v941, %v970
          %v981 = vmul.f32 %v942, %v970
          %v982 = vmul.f32 %v943, %v970
          %v983 = vmul.f32 %v944, %v970
          %v984 = vmul.f32 %v945, %v970
          %v985 = vmul.f32 %v946, %v970
          %v986 = vmul.f32 %v947, %v970
          %v987 = vmul.f32 %v948, %v970
          %v988 = vmul.f32 %v949, %v970
          %v989 = vmul.f32 %v950, %v970
          %v990 = vmul.f32 %v951, %v970
          %v991 = vmul.f32 %v952, %v970
          %v992 = vmul.f32 %v953, %v970
          %v993 = vmul.f32 %v954, %v970
          %v994 = vmul.f32 %v955, %v970
          %v995 = vmul.f32 %v956, %v970
          %v996 = vmul.f32 %v957, %v970
          %v997 = vmul.f32 %v958, %v970
          %v998 = vmul.f32 %v959, %v970
          %v999 = vmul.f32 %v960, %v970
          %v1000 = vmul.f32 %v961, %v970
          %v1001 = vmul.f32 %v962, %v970
          %v1002 = vmul.f32 %v963, %v970
          %v1003 = vmul.f32 %v964, %v970
          %v1004 = vld [vmem:[%s304] sm:$0x1]
          %v1006 = vlaneseq
          %v1007 = vshrl.u32 %v1006, 7
          %v1008 = vsub.s32 0, %v1007
          %v1009 = vrot.slane %v1004, %v1008
          %v1011 = vadd.f32 %v972, %v1009
          %v1012 = vadd.f32 %v973, %v1009
          %v1013 = vadd.f32 %v974, %v1009
          %v1014 = vadd.f32 %v975, %v1009
          %v1015 = vadd.f32 %v976, %v1009
          %v1016 = vadd.f32 %v977, %v1009
          %v1017 = vadd.f32 %v978, %v1009
          %v1018 = vadd.f32 %v979, %v1009
          %v1019 = vadd.f32 %v980, %v1009
          %v1020 = vadd.f32 %v981, %v1009
          %v1021 = vadd.f32 %v982, %v1009
          %v1022 = vadd.f32 %v983, %v1009
          %v1023 = vadd.f32 %v984, %v1009
          %v1024 = vadd.f32 %v985, %v1009
          %v1025 = vadd.f32 %v986, %v1009
          %v1026 = vadd.f32 %v987, %v1009
          %v1027 = vadd.f32 %v988, %v1009
          %v1028 = vadd.f32 %v989, %v1009
          %v1029 = vadd.f32 %v990, %v1009
          %v1030 = vadd.f32 %v991, %v1009
          %v1031 = vadd.f32 %v992, %v1009
          %v1032 = vadd.f32 %v993, %v1009
          %v1033 = vadd.f32 %v994, %v1009
          %v1034 = vadd.f32 %v995, %v1009
          %v1035 = vadd.f32 %v996, %v1009
          %v1036 = vadd.f32 %v997, %v1009
          %v1037 = vadd.f32 %v998, %v1009
          %v1038 = vadd.f32 %v999, %v1009
          %v1039 = vadd.f32 %v1000, %v1009
          %v1040 = vadd.f32 %v1001, %v1009
          %v1041 = vadd.f32 %v1002, %v1009
          %v1042 = vadd.f32 %v1003, %v1009
          %v1043 = vmax.f32 %v1011, 0.0
          %v1044 = vmax.f32 %v1012, 0.0
          %v1045 = vmax.f32 %v1013, 0.0
          %v1046 = vmax.f32 %v1014, 0.0
          %v1047 = vmax.f32 %v1015, 0.0
          %v1048 = vmax.f32 %v1016, 0.0
          %v1049 = vmax.f32 %v1017, 0.0
          %v1050 = vmax.f32 %v1018, 0.0
          %v1051 = vmax.f32 %v1019, 0.0
          %v1052 = vmax.f32 %v1020, 0.0
          %v1053 = vmax.f32 %v1021, 0.0
          %v1054 = vmax.f32 %v1022, 0.0
          %v1055 = vmax.f32 %v1023, 0.0
          %v1056 = vmax.f32 %v1024, 0.0
          %v1057 = vmax.f32 %v1025, 0.0
          %v1058 = vmax.f32 %v1026, 0.0
          %v1059 = vmax.f32 %v1027, 0.0
          %v1060 = vmax.f32 %v1028, 0.0
          %v1061 = vmax.f32 %v1029, 0.0
          %v1062 = vmax.f32 %v1030, 0.0
          %v1063 = vmax.f32 %v1031, 0.0
          %v1064 = vmax.f32 %v1032, 0.0
          %v1065 = vmax.f32 %v1033, 0.0
          %v1066 = vmax.f32 %v1034, 0.0
          %v1067 = vmax.f32 %v1035, 0.0
          %v1068 = vmax.f32 %v1036, 0.0
          %v1069 = vmax.f32 %v1037, 0.0
          %v1070 = vmax.f32 %v1038, 0.0
          %v1071 = vmax.f32 %v1039, 0.0
          %v1072 = vmax.f32 %v1040, 0.0
          %v1073 = vmax.f32 %v1041, 0.0
          %v1074 = vmax.f32 %v1042, 0.0
          %v1075 = vpack.c.bf16 %v1044, %v1043
          %v1076 = vpack.c.bf16 %v1046, %v1045
          %v1077 = vpack.c.bf16 %v1048, %v1047
          %v1078 = vpack.c.bf16 %v1050, %v1049
          %v1079 = vpack.c.bf16 %v1052, %v1051
          %v1080 = vpack.c.bf16 %v1054, %v1053
          %v1081 = vpack.c.bf16 %v1056, %v1055
          %v1082 = vpack.c.bf16 %v1058, %v1057
          %v1083 = vpack.c.bf16 %v1060, %v1059
          %v1084 = vpack.c.bf16 %v1062, %v1061
          %v1085 = vpack.c.bf16 %v1064, %v1063
          %v1086 = vpack.c.bf16 %v1066, %v1065
          %v1087 = vpack.c.bf16 %v1068, %v1067
          %v1088 = vpack.c.bf16 %v1070, %v1069
          %v1089 = vpack.c.bf16 %v1072, %v1071
          %v1090 = vpack.c.bf16 %v1074, %v1073
          %v1107 = vunpack.c.l.b16 %v1075
          %v1108 = vunpack.c.h.b16 %v1075
          %v1109 = vunpack.c.l.b16 %v1076
          %v1110 = vunpack.c.h.b16 %v1076
          %v1111 = vunpack.c.l.b16 %v1077
          %v1112 = vunpack.c.h.b16 %v1077
          %v1113 = vunpack.c.l.b16 %v1078
          %v1114 = vunpack.c.h.b16 %v1078
          %v1115 = vunpack.c.l.b16 %v1079
          %v1116 = vunpack.c.h.b16 %v1079
          %v1117 = vunpack.c.l.b16 %v1080
          %v1118 = vunpack.c.h.b16 %v1080
          %v1119 = vunpack.c.l.b16 %v1081
          %v1120 = vunpack.c.h.b16 %v1081
          %v1121 = vunpack.c.l.b16 %v1082
          %v1122 = vunpack.c.h.b16 %v1082
          %v1123 = vunpack.c.l.b16 %v1083
          %v1124 = vunpack.c.h.b16 %v1083
          %v1125 = vunpack.c.l.b16 %v1084
          %v1126 = vunpack.c.h.b16 %v1084
          %v1127 = vunpack.c.l.b16 %v1085
          %v1128 = vunpack.c.h.b16 %v1085
          %v1129 = vunpack.c.l.b16 %v1086
          %v1130 = vunpack.c.h.b16 %v1086
          %v1131 = vunpack.c.l.b16 %v1087
          %v1132 = vunpack.c.h.b16 %v1087
          %v1133 = vunpack.c.l.b16 %v1088
          %v1134 = vunpack.c.h.b16 %v1088
          %v1135 = vunpack.c.l.b16 %v1089
          %v1136 = vunpack.c.h.b16 %v1089
          %v1137 = vunpack.c.l.b16 %v1090
          %v1138 = vunpack.c.h.b16 %v1090
          %v1139 = vpack.c.b16 %v1107, %v1107
          %v1140 = vpack.c.b16 %v1108, %v1108
          %v1141 = vpack.c.b16 %v1109, %v1109
          %v1142 = vpack.c.b16 %v1110, %v1110
          %v1143 = vpack.c.b16 %v1111, %v1111
          %v1144 = vpack.c.b16 %v1112, %v1112
          %v1145 = vpack.c.b16 %v1113, %v1113
          %v1146 = vpack.c.b16 %v1114, %v1114
          %v1147 = vpack.c.b16 %v1115, %v1115
          %v1148 = vpack.c.b16 %v1116, %v1116
          %v1149 = vpack.c.b16 %v1117, %v1117
          %v1150 = vpack.c.b16 %v1118, %v1118
          %v1151 = vpack.c.b16 %v1119, %v1119
          %v1152 = vpack.c.b16 %v1120, %v1120
          %v1153 = vpack.c.b16 %v1121, %v1121
          %v1154 = vpack.c.b16 %v1122, %v1122
          %v1155 = vpack.c.b16 %v1123, %v1123
          %v1156 = vpack.c.b16 %v1124, %v1124
          %v1157 = vpack.c.b16 %v1125, %v1125
          %v1158 = vpack.c.b16 %v1126, %v1126
          %v1159 = vpack.c.b16 %v1127, %v1127
          %v1160 = vpack.c.b16 %v1128, %v1128
          %v1161 = vpack.c.b16 %v1129, %v1129
          %v1162 = vpack.c.b16 %v1130, %v1130
          %v1163 = vpack.c.b16 %v1131, %v1131
          %v1164 = vpack.c.b16 %v1132, %v1132
          %v1165 = vpack.c.b16 %v1133, %v1133
          %v1166 = vpack.c.b16 %v1134, %v1134
          %v1167 = vpack.c.b16 %v1135, %v1135
          %v1168 = vpack.c.b16 %v1136, %v1136
          %v1169 = vpack.c.b16 %v1137, %v1137
          %v1170 = vpack.c.b16 %v1138, %v1138
          %vm1203 = vcmask 519168
          %1204 = vst.msk [vmem:[%s312] sm:$0xf] %vm1203, %v1139
          %1205 = vst.msk [vmem:[%s312 + $0x4] sm:$0xf] %vm1203, %v1140
          %1206 = vst.msk [vmem:[%s312 + $0x8] sm:$0xf] %vm1203, %v1141
          %1207 = vst.msk [vmem:[%s312 + $0xc] sm:$0xf] %vm1203, %v1142
          %1208 = vst.msk [vmem:[%s312 + $0x10] sm:$0xf] %vm1203, %v1143
          %1209 = vst.msk [vmem:[%s312 + $0x14] sm:$0xf] %vm1203, %v1144
          %1210 = vst.msk [vmem:[%s312 + $0x18] sm:$0xf] %vm1203, %v1145
          %1211 = vst.msk [vmem:[%s312 + $0x1c] sm:$0xf] %vm1203, %v1146
          %1212 = vst.msk [vmem:[%s312 + $0x20] sm:$0xf] %vm1203, %v1147
          %1213 = vst.msk [vmem:[%s312 + $0x24] sm:$0xf] %vm1203, %v1148
          %1214 = vst.msk [vmem:[%s312 + $0x28] sm:$0xf] %vm1203, %v1149
          %1215 = vst.msk [vmem:[%s312 + $0x2c] sm:$0xf] %vm1203, %v1150
          %1216 = vst.msk [vmem:[%s312 + $0x30] sm:$0xf] %vm1203, %v1151
          %1217 = vst.msk [vmem:[%s312 + $0x34] sm:$0xf] %vm1203, %v1152
          %1218 = vst.msk [vmem:[%s312 + $0x38] sm:$0xf] %vm1203, %v1153
          %1219 = vst.msk [vmem:[%s312 + $0x3c] sm:$0xf] %vm1203, %v1154
          %1220 = vst.msk [vmem:[%s312 + $0x40] sm:$0xf] %vm1203, %v1155
          %1221 = vst.msk [vmem:[%s312 + $0x44] sm:$0xf] %vm1203, %v1156
          %1222 = vst.msk [vmem:[%s312 + $0x48] sm:$0xf] %vm1203, %v1157
          %1223 = vst.msk [vmem:[%s312 + $0x4c] sm:$0xf] %vm1203, %v1158
          %1224 = vst.msk [vmem:[%s312 + $0x50] sm:$0xf] %vm1203, %v1159
          %1225 = vst.msk [vmem:[%s312 + $0x54] sm:$0xf] %vm1203, %v1160
          %1226 = vst.msk [vmem:[%s312 + $0x58] sm:$0xf] %vm1203, %v1161
          %1227 = vst.msk [vmem:[%s312 + $0x5c] sm:$0xf] %vm1203, %v1162
          %1228 = vst.msk [vmem:[%s312 + $0x60] sm:$0xf] %vm1203, %v1163
          %1229 = vst.msk [vmem:[%s312 + $0x64] sm:$0xf] %vm1203, %v1164
          %1230 = vst.msk [vmem:[%s312 + $0x68] sm:$0xf] %vm1203, %v1165
          %1231 = vst.msk [vmem:[%s312 + $0x6c] sm:$0xf] %vm1203, %v1166
          %1232 = vst.msk [vmem:[%s312 + $0x70] sm:$0xf] %vm1203, %v1167
          %1233 = vst.msk [vmem:[%s312 + $0x74] sm:$0xf] %vm1203, %v1168
          %1234 = vst.msk [vmem:[%s312 + $0x78] sm:$0xf] %vm1203, %v1169
          %1235 = vst.msk [vmem:[%s312 + $0x7c] sm:$0xf] %vm1203, %v1170
        $region48: #{tpu_custom_call.1} parent=35 // pred_fallthru
          _
        %s1236 = smul.u32 32, %s23
        %p1237 = scmp.lt.s32.totalorder %s1236, 255
        %s1238 = scalar_select %p1237, %s1236, 255
        %p1239 = scmp.lt.s32.totalorder %s24, 0
        %s1240 = scalar_select %p1239, %s24, 0
        %s1241 = sadd.s32 %s1240, %s1238
        %s1242 = smul.addr %s1241, 4
        %s1243 = scalar_lea.vmem %s4, %s1242
        // Predicated region
        $region49: #{tpu_custom_call.1} parent=35 // pred_check
          %p1244 = pneg %p165
        $region50: #{tpu_custom_call.1} parent=35 // pred_check_branch
          %1246 = sbr.rel (%p1244) target = $region52
        $region51: #{tpu_custom_call.1} parent=35 // pred_region
          %s1247 = smul.u32 32, %s23
        $region52: #{tpu_custom_call.1} parent=35 // pred_fallthru
          _
      $region36: #{tpu_custom_call.1} parent=5 // pred_fallthru
        _
      %p1248 = scmp.le.s32.totalorder 2, %s13
      // Predicated region
      $region53: #{tpu_custom_call.1} parent=5 // pred_check
        %p1249 = pneg %p1248
      $region54: #{tpu_custom_call.1} parent=5 // pred_check_branch
        %1251 = sbr.rel (%p1249) target = $region56
      $region55: #{tpu_custom_call.1} parent=5 // pred_region
        %s1252 = ssub.s32 %s13, 2
        // Predicated region
        $region57: #{tpu_custom_call.1} parent=55 // pred_check
          %p1253 = pneg %p171
        $region58: #{tpu_custom_call.1} parent=55 // pred_check_branch
          %1255 = sbr.rel (%p1253) target = $region60
        $region59: #{tpu_custom_call.1} parent=55 // pred_region
          %s1256 = smul.u32 32, %s26
          %p1257 = scmp.lt.s32.totalorder %s1256, 255
          %s1258 = scalar_select %p1257, %s1256, 255
          %p1259 = scmp.lt.s32.totalorder %s27, 0
          %s1260 = scalar_select %p1259, %s27, 0
          %s1261 = sadd.s32 %s1260, %s1258
          %s1262 = smul.addr %s1261, 4
          %s1263 = scalar_lea.vmem %s4, %s1262
        $region60: #{tpu_custom_call.1} parent=55 // pred_fallthru
          _
      $region56: #{tpu_custom_call.1} parent=5 // pred_fallthru
        _
    $region6: #{tpu_custom_call.1} parent=1 // loop_footer
      %s17 = sadd.s32 1, %s13
    $region7: #{tpu_custom_call.1} parent=1 // loop_footer_branch
      %12 = sbr.rel target = $region3
    $region8: #{tpu_custom_call.1} parent=1 // loop_exit
      _
    %1264 = vsyncpa [#allocation4], 1
    %s1265 = scalar_lea.sflag [#allocation4], 1
    %1266 = vsyncpa %s1265, 1

</llo_original>
